<compile_context>
chip_gen: v6e
topology: v6e:2x2x1
jax: 0.10.0
libtpu: 0.0.40
codegen_flags: <defaults>
</compile_context>

<pallas_src>
import functools
import math

import jax
import jax.numpy as jnp
from jax.experimental import pallas as pl
from jax.experimental.pallas import tpu as pltpu


def _covfixlgm_kernel(feat_ref, s_ref, q_ref, lab_ref, logits_ref, margin_ref,
                      *, alpha, feat_dim, pack):
    """One batch tile.

    feat_ref : (TB, pack*D)  -- `pack` original batch rows packed along lanes.
    s_ref    : (1, pack*D) f32 -- tiled per-row sums of centers (resident).
    q_ref    : (1, pack*D) f32 -- tiled per-row sums of centers**2 (resident).
    lab_ref  : (TB, pack) int32 -- labels of the packed rows.
    """
    f = feat_ref[...].astype(jnp.float32)
    s = s_ref[...]
    q = q_ref[...]
    lab = lab_ref[...]

    # dist[b, i] = D*f^2 - 2*f*s_i + q_i   (expanded quadratic, see header)
    dist = f * (jnp.float32(feat_dim) * f - 2.0 * s) + q
    logits = -0.5 * dist

    # one-hot: packed sub-row g gets the alpha boost at lane g*D + label[g]
    lane = jax.lax.broadcasted_iota(jnp.int32, f.shape, 1)
    onehot = lane == lab[:, 0:1]
    for g in range(1, pack):
        onehot = jnp.logical_or(onehot, lane == (lab[:, g:g + 1] + g * feat_dim))

    margin = jnp.where(onehot, (1.0 + float(alpha)) * logits, logits)

    logits_ref[...] = logits.astype(logits_ref.dtype)
    margin_ref[...] = margin.astype(margin_ref.dtype)


def _pick_row_tile(num_rows, width):
    # Keep each f32 block around <= 2 MiB so double-buffered feat + 2 outputs
    # comfortably fit v7x's smaller VMEM (and v5e/v6e trivially).
    max_rows = max(8, ((2 * 1024 * 1024 // 4) // max(width, 1)) // 8 * 8)
    max_rows = min(max_rows, 1024)
    if num_rows <= max_rows:
        return num_rows          # single-tile rows (full dim -> always legal)
    return max_rows              # multiple of 8 -> legal with a cdiv tail block


def covfixlgm_forward(feat, centers, label, alpha):
    B, D = feat.shape
    C, Dc = centers.shape
    assert Dc == D
    # The PyTorch broadcasting only works when num_classes == feat_dim.
    assert C == D, "CovFixLGM.forward requires num_classes == feat_dim"

    # Hoisted center statistics (computed once in plain jnp, amortized
    # over the whole batch): s_i = sum_j c[i,j], q_i = sum_j c[i,j]^2.
    c32 = centers.astype(jnp.float32)
    s = jnp.sum(c32, axis=1).reshape(1, C)
    q = jnp.sum(c32 * c32, axis=1).reshape(1, C)

    # Lane packing: put `pack` consecutive batch rows side-by-side along lanes
    # so the store slab is a multiple of 128 lanes (dense, unmasked stores).
    cand = 128 // math.gcd(D, 128)
    pack = cand if (cand > 1 and B % cand == 0) else 1
    W = pack * D
    BP = B // pack

    feat_p = feat.reshape(BP, W)                            # free (row-major)
    lab_p = label.astype(jnp.int32).reshape(BP, pack)
    s_p = jnp.tile(s, (1, pack))                            # (1, W)
    q_p = jnp.tile(q, (1, pack))                            # (1, W)

    tb = _pick_row_tile(BP, W)
    grid = (pl.cdiv(BP, tb),)

    kernel = functools.partial(_covfixlgm_kernel, alpha=float(alpha),
                               feat_dim=D, pack=pack)
    logits_p, margin_p = pl.pallas_call(
        kernel,
        out_shape=(jax.ShapeDtypeStruct((BP, W), jnp.float32),
                   jax.ShapeDtypeStruct((BP, W), jnp.float32)),
        grid=grid,
        in_specs=[
            pl.BlockSpec((tb, W), lambda i: (i, 0)),        # feat tile
            pl.BlockSpec((1, W), lambda i: (0, 0)),         # s (resident)
            pl.BlockSpec((1, W), lambda i: (0, 0)),         # q (resident)
            pl.BlockSpec((tb, pack), lambda i: (i, 0)),     # labels tile
        ],
        out_specs=[
            pl.BlockSpec((tb, W), lambda i: (i, 0)),
            pl.BlockSpec((tb, W), lambda i: (i, 0)),
        ],
        compiler_params=pltpu.CompilerParams(
            dimension_semantics=("parallel",)),             # v7x: 2 TCs
    )(feat_p, s_p, q_p, lab_p)

    return logits_p.reshape(B, C), margin_p.reshape(B, C)


def covfixlgm_reference(feat, centers, label, alpha):
    # Pure-JAX reimplementation of the exact PyTorch broadcasting.
    diff = feat[:, :, None] - centers[None, :, :]       # (B,D,1) - (1,C,D)
    dist = jnp.sum(diff * diff, axis=-1)                # (B, C)
    B, C = dist.shape
    y_onehot = jnp.zeros((B, C), jnp.float32).at[
        jnp.arange(B), label].set(jnp.float32(alpha)) + 1.0
    logits = -0.5 * dist
    margin_logits = -0.5 * dist * y_onehot
    return logits, margin_logits


def _check(batch, num_classes, feat_dim, alpha, seed):
    key = jax.random.PRNGKey(seed)
    k_centers, k_feat, k_label = jax.random.split(key, 3)
    centers = jax.random.normal(k_centers, (num_classes, feat_dim), jnp.float32)
    feat = jax.random.normal(k_feat, (batch, feat_dim), jnp.float32)
    label = jax.random.randint(k_label, (batch,), 0, num_classes, jnp.int32)

    logits, margin_logits = covfixlgm_forward(feat, centers, label, alpha)
    jax.block_until_ready((logits, margin_logits))

    ref_logits, ref_margin = covfixlgm_reference(feat, centers, label, alpha)
    assert logits.shape == (batch, num_classes)
    assert margin_logits.shape == (batch, num_classes)
    assert jnp.allclose(logits, ref_logits, rtol=1e-5, atol=1e-3)
    assert jnp.allclose(margin_logits, ref_margin, rtol=1e-5, atol=1e-3)


if __name__ == "__main__":
    # Module config: num_classes == feat_dim (required by the original code's
    # broadcasting).  Small synthetic shapes.
    # TODO(synk): the dead `likelihood` return in the PyTorch source (after the
    # first return) is unreachable and not implemented.
    _check(batch=8, num_classes=16, feat_dim=16, alpha=0.3, seed=0)   # BP=1
    _check(batch=64, num_classes=16, feat_dim=16, alpha=0.3, seed=1)  # BP=8 (packed rows)
    print("KERNEL_OK")
</pallas_src>

<mosaic_0001>
module attributes {stable_mosaic.version = 11 : i64} {
  func.func @_covfixlgm_kernel(%arg0: i32, %arg1: memref<1x128xf32, #tpu.memory_space<vmem>>, %arg2: memref<1x128xf32, #tpu.memory_space<vmem>>, %arg3: memref<1x128xf32, #tpu.memory_space<vmem>>, %arg4: memref<1x8xi32, #tpu.memory_space<vmem>>, %arg5: memref<1x128xf32, #tpu.memory_space<vmem>>, %arg6: memref<1x128xf32, #tpu.memory_space<vmem>>) attributes {dimension_semantics = [#tpu.dimension_semantics<parallel>], iteration_bounds = array<i64: 1>, scalar_prefetch = 0 : i64, scratch_operands = 0 : i64, tpu.core_type = #tpu.core_type<tc>, window_params = [{transform_indices = @transform_0, window_bounds = array<i64: 1, 128>}, {pipeline_mode = #tpu.pipeline_mode<synchronous>, transform_indices = @transform_1, window_bounds = array<i64: 1, 128>}, {pipeline_mode = #tpu.pipeline_mode<synchronous>, transform_indices = @transform_2, window_bounds = array<i64: 1, 128>}, {transform_indices = @transform_3, window_bounds = array<i64: 1, 8>}, {transform_indices = @transform_4, window_bounds = array<i64: 1, 128>}, {transform_indices = @transform_5, window_bounds = array<i64: 1, 128>}]} {
    %c0 = arith.constant 0 : index
    %c0_0 = arith.constant 0 : index
    %0 = vector.load %arg1[%c0, %c0_0] : memref<1x128xf32, #tpu.memory_space<vmem>>, vector<1x128xf32>
    %c0_1 = arith.constant 0 : index
    %c0_2 = arith.constant 0 : index
    %1 = vector.load %arg2[%c0_1, %c0_2] : memref<1x128xf32, #tpu.memory_space<vmem>>, vector<1x128xf32>
    %c0_3 = arith.constant 0 : index
    %c0_4 = arith.constant 0 : index
    %2 = vector.load %arg3[%c0_3, %c0_4] : memref<1x128xf32, #tpu.memory_space<vmem>>, vector<1x128xf32>
    %c0_5 = arith.constant 0 : index
    %c0_6 = arith.constant 0 : index
    %3 = vector.load %arg4[%c0_5, %c0_6] : memref<1x8xi32, #tpu.memory_space<vmem>>, vector<1x8xi32>
    %cst = arith.constant 1.600000e+01 : f32
    %4 = vector.broadcast %cst : f32 to vector<1x128xf32>
    %5 = arith.mulf %4, %0 : vector<1x128xf32>
    %cst_7 = arith.constant 2.000000e+00 : f32
    %6 = vector.broadcast %cst_7 : f32 to vector<1x128xf32>
    %7 = arith.mulf %6, %1 : vector<1x128xf32>
    %8 = arith.subf %5, %7 : vector<1x128xf32>
    %9 = arith.mulf %0, %8 : vector<1x128xf32>
    %10 = arith.addf %9, %2 : vector<1x128xf32>
    %cst_8 = arith.constant -5.000000e-01 : f32
    %11 = vector.broadcast %cst_8 : f32 to vector<1x128xf32>
    %12 = arith.mulf %11, %10 : vector<1x128xf32>
    %13 = tpu.iota {dimensions = array<i32: 1>} : vector<1x128xi32>
    %14 = vector.extract_strided_slice %3 {offsets = [0, 0], sizes = [1, 1], strides = [1, 1]} : vector<1x8xi32> to vector<1x1xi32>
    %15 = vector.broadcast %14 : vector<1x1xi32> to vector<1x128xi32>
    %16 = arith.cmpi eq, %13, %15 : vector<1x128xi32>
    %17 = vector.extract_strided_slice %3 {offsets = [0, 1], sizes = [1, 1], strides = [1, 1]} : vector<1x8xi32> to vector<1x1xi32>
    %c16_i32 = arith.constant 16 : i32
    %18 = vector.broadcast %c16_i32 : i32 to vector<1x1xi32>
    %19 = arith.addi %17, %18 : vector<1x1xi32>
    %20 = vector.broadcast %19 : vector<1x1xi32> to vector<1x128xi32>
    %21 = arith.cmpi eq, %13, %20 : vector<1x128xi32>
    %22 = arith.ori %16, %21 : vector<1x128xi1>
    %23 = vector.extract_strided_slice %3 {offsets = [0, 2], sizes = [1, 1], strides = [1, 1]} : vector<1x8xi32> to vector<1x1xi32>
    %c32_i32 = arith.constant 32 : i32
    %24 = vector.broadcast %c32_i32 : i32 to vector<1x1xi32>
    %25 = arith.addi %23, %24 : vector<1x1xi32>
    %26 = vector.broadcast %25 : vector<1x1xi32> to vector<1x128xi32>
    %27 = arith.cmpi eq, %13, %26 : vector<1x128xi32>
    %28 = arith.ori %22, %27 : vector<1x128xi1>
    %29 = vector.extract_strided_slice %3 {offsets = [0, 3], sizes = [1, 1], strides = [1, 1]} : vector<1x8xi32> to vector<1x1xi32>
    %c48_i32 = arith.constant 48 : i32
    %30 = vector.broadcast %c48_i32 : i32 to vector<1x1xi32>
    %31 = arith.addi %29, %30 : vector<1x1xi32>
    %32 = vector.broadcast %31 : vector<1x1xi32> to vector<1x128xi32>
    %33 = arith.cmpi eq, %13, %32 : vector<1x128xi32>
    %34 = arith.ori %28, %33 : vector<1x128xi1>
    %35 = vector.extract_strided_slice %3 {offsets = [0, 4], sizes = [1, 1], strides = [1, 1]} : vector<1x8xi32> to vector<1x1xi32>
    %c64_i32 = arith.constant 64 : i32
    %36 = vector.broadcast %c64_i32 : i32 to vector<1x1xi32>
    %37 = arith.addi %35, %36 : vector<1x1xi32>
    %38 = vector.broadcast %37 : vector<1x1xi32> to vector<1x128xi32>
    %39 = arith.cmpi eq, %13, %38 : vector<1x128xi32>
    %40 = arith.ori %34, %39 : vector<1x128xi1>
    %41 = vector.extract_strided_slice %3 {offsets = [0, 5], sizes = [1, 1], strides = [1, 1]} : vector<1x8xi32> to vector<1x1xi32>
    %c80_i32 = arith.constant 80 : i32
    %42 = vector.broadcast %c80_i32 : i32 to vector<1x1xi32>
    %43 = arith.addi %41, %42 : vector<1x1xi32>
    %44 = vector.broadcast %43 : vector<1x1xi32> to vector<1x128xi32>
    %45 = arith.cmpi eq, %13, %44 : vector<1x128xi32>
    %46 = arith.ori %40, %45 : vector<1x128xi1>
    %47 = vector.extract_strided_slice %3 {offsets = [0, 6], sizes = [1, 1], strides = [1, 1]} : vector<1x8xi32> to vector<1x1xi32>
    %c96_i32 = arith.constant 96 : i32
    %48 = vector.broadcast %c96_i32 : i32 to vector<1x1xi32>
    %49 = arith.addi %47, %48 : vector<1x1xi32>
    %50 = vector.broadcast %49 : vector<1x1xi32> to vector<1x128xi32>
    %51 = arith.cmpi eq, %13, %50 : vector<1x128xi32>
    %52 = arith.ori %46, %51 : vector<1x128xi1>
    %53 = vector.extract_strided_slice %3 {offsets = [0, 7], sizes = [1, 1], strides = [1, 1]} : vector<1x8xi32> to vector<1x1xi32>
    %c112_i32 = arith.constant 112 : i32
    %54 = vector.broadcast %c112_i32 : i32 to vector<1x1xi32>
    %55 = arith.addi %53, %54 : vector<1x1xi32>
    %56 = vector.broadcast %55 : vector<1x1xi32> to vector<1x128xi32>
    %57 = arith.cmpi eq, %13, %56 : vector<1x128xi32>
    %58 = arith.ori %52, %57 : vector<1x128xi1>
    %cst_9 = arith.constant 1.300000e+00 : f32
    %59 = vector.broadcast %cst_9 : f32 to vector<1x128xf32>
    %60 = arith.mulf %59, %12 : vector<1x128xf32>
    %61 = arith.select %58, %60, %12 : vector<1x128xi1>, vector<1x128xf32>
    %c0_10 = arith.constant 0 : index
    %c0_11 = arith.constant 0 : index
    %62 = vector.load %arg5[%c0_10, %c0_11] : memref<1x128xf32, #tpu.memory_space<vmem>>, vector<1x128xf32>
    tpu.vector_store %arg5[%c0_10, %c0_11], %12 {strides = array<i32>} : memref<1x128xf32, #tpu.memory_space<vmem>>, vector<1x128xf32>,
    %c0_12 = arith.constant 0 : index
    %c0_13 = arith.constant 0 : index
    %63 = vector.load %arg6[%c0_12, %c0_13] : memref<1x128xf32, #tpu.memory_space<vmem>>, vector<1x128xf32>
    tpu.vector_store %arg6[%c0_12, %c0_13], %61 {strides = array<i32>} : memref<1x128xf32, #tpu.memory_space<vmem>>, vector<1x128xf32>,
    return
  }
  func.func @transform_0(%arg0: i32) -> (i32, i32) {
    %c0_i32 = arith.constant 0 : i32
    %c0_i32_0 = arith.constant 0 : i32
    return %arg0, %c0_i32 : i32, i32
  }
  func.func @transform_1(%arg0: i32) -> (i32, i32) {
    %c0_i32 = arith.constant 0 : i32
    %c0_i32_0 = arith.constant 0 : i32
    %c0_i32_1 = arith.constant 0 : i32
    return %c0_i32, %c0_i32_0 : i32, i32
  }
  func.func @transform_2(%arg0: i32) -> (i32, i32) {
    %c0_i32 = arith.constant 0 : i32
    %c0_i32_0 = arith.constant 0 : i32
    %c0_i32_1 = arith.constant 0 : i32
    return %c0_i32, %c0_i32_0 : i32, i32
  }
  func.func @transform_3(%arg0: i32) -> (i32, i32) {
    %c0_i32 = arith.constant 0 : i32
    %c0_i32_0 = arith.constant 0 : i32
    return %arg0, %c0_i32 : i32, i32
  }
  func.func @transform_4(%arg0: i32) -> (i32, i32) {
    %c0_i32 = arith.constant 0 : i32
    %c0_i32_0 = arith.constant 0 : i32
    return %arg0, %c0_i32 : i32, i32
  }
  func.func @transform_5(%arg0: i32) -> (i32, i32) {
    %c0_i32 = arith.constant 0 : i32
    %c0_i32_0 = arith.constant 0 : i32
    return %arg0, %c0_i32 : i32, i32
  }
}

</mosaic_0001>

<llo_original>
// kernel: tpu_custom_call.1
$region0: #{tpu_custom_call.1}
  #allocation0 [shape = 'u32[]', space=smem, size = 0x4, offset = 0x4, fixed_abs, tag = 'smem constant byte address 0x4 - core index']
  #allocation1 [shape = 'u32[144,128]{1,0:T(1,128)}', space=vmem, size = 0x12000, scoped, tag = 'internal scratch']
  %s0 = inlined_call_operand.hbm [shape: f32[1,128], index: 0, kind: input, shape index: {}]
  %s1 = inlined_call_operand.vmem [shape: f32[1,128], index: 1, kind: input, shape index: {}]
  %s2 = inlined_call_operand.vmem [shape: f32[1,128], index: 2, kind: input, shape index: {}]
  %s3 = inlined_call_operand.vmem [shape: s32[1,8], index: 3, kind: input, shape index: {}]
  %s4 = inlined_call_operand.hbm [shape: f32[1,128], index: 4, kind: output, shape index: {0}]
  %s5 = inlined_call_operand.hbm [shape: f32[1,128], index: 5, kind: output, shape index: {1}]
  %6 = xla_tuple %s4, %s5
  %s7 = sld [smem:[#allocation0]]
  $region38: #{tpu_custom_call.1} parent=0
    _
  %s9 = ssub.s32 1, %s7
  %s10 = scalar_select 0, %s9, %s7
  $region1: #{tpu_custom_call.1} parent=0
    #allocation2 [shape = 'u8[512]{0}', space=vmem, size = 0x400, scoped, tag = 'input window, operand 0, single buffered']
    #allocation3 [shape = 's32[1]{0}', space=sflag, size = 0x4, scoped, tag = 'scoped memory for tpu_custom_call.1']
    #allocation4 [shape = 's32[1]{0}', space=sflag, size = 0x4, scoped, tag = 'scoped memory for tpu_custom_call.1']
    #allocation5 [shape = 'u8[512]{0}', space=vmem, size = 0x400, scoped, tag = 'output window, operand 0, single buffered']
    #allocation6 [shape = 'u8[512]{0}', space=vmem, size = 0x400, scoped, tag = 'output window, operand 1, single buffered']
    #allocation7 [shape = 's32[1]{0}', space=sflag, size = 0x4, scoped, tag = 'scoped memory for tpu_custom_call.1']
    %11 = vsyncpa [#allocation3], 0
    %12 = vsyncpa [#allocation4], 0
    %13 = vsyncpa [#allocation7], 0
    // Predicated region
    $region2: #{tpu_custom_call.1} parent=1 // pred_check
      _
    $region3: #{tpu_custom_call.1} parent=1 // pred_check_branch
      %15 = sbr.rel (0) target = $region5
    $region4: #{tpu_custom_call.1} parent=1 // pred_region
      %s17 = ssub.s32 16, 16
      %18 = vsyncadd [#allocation3], %s17
      %s20 = sshll.u32 [#allocation2], 4
      %s21 = int_to_ptr.vmem [resolvable:$true] %s20
      %23 = dma.hbm_to_vmem [thread:$0]  %s0, 16, %s21, [#allocation3]
    $region5: #{tpu_custom_call.1} parent=1 // pred_fallthru
      _
    // Predicated region
    $region6: #{tpu_custom_call.1} parent=1 // pred_check
      _
    $region7: #{tpu_custom_call.1} parent=1 // pred_check_branch
      %25 = sbr.rel (0) target = $region9
    $region8: #{tpu_custom_call.1} parent=1 // pred_region
      _
    $region9: #{tpu_custom_call.1} parent=1 // pred_fallthru
      _
    // Predicated region
    $region10: #{tpu_custom_call.1} parent=1 // pred_check
      _
    $region11: #{tpu_custom_call.1} parent=1 // pred_check_branch
      %27 = sbr.rel (0) target = $region13
    $region12: #{tpu_custom_call.1} parent=1 // pred_region
      _
    $region13: #{tpu_custom_call.1} parent=1 // pred_fallthru
      _
    // Predicated region
    $region14: #{tpu_custom_call.1} parent=1 // pred_check
      _
    $region15: #{tpu_custom_call.1} parent=1 // pred_check_branch
      %29 = sbr.rel (0) target = $region17
    $region16: #{tpu_custom_call.1} parent=1 // pred_region
      _
    $region17: #{tpu_custom_call.1} parent=1 // pred_fallthru
      _
    // Predicated region
    $region18: #{tpu_custom_call.1} parent=1 // pred_check
      _
    $region19: #{tpu_custom_call.1} parent=1 // pred_check_branch
      %31 = sbr.rel (0) target = $region21
    $region20: #{tpu_custom_call.1} parent=1 // pred_region
      %32 = dma.done [#allocation3], 16
    $region21: #{tpu_custom_call.1} parent=1 // pred_fallthru
      _
    %v33 = vld [vmem:[#allocation2] sm:$0x1]
    %v34 = vld [vmem:[%s1] sm:$0x1]
    %v35 = vld [vmem:[%s2] sm:$0x1]
    %v36 = vld [vmem:[%s3] sm:$0x1]
    %v37 = vmul.f32 %v33, 16.0
    %v38 = vmul.f32 %v34, 2.0
    %v39 = vsub.f32 %v37, %v38
    %v40 = vmul.f32 %v33, %v39
    %v41 = vadd.f32 %v40, %v35
    %v42 = vmul.f32 %v41, -0.5
    %v43 = vlaneseq
    %v44 = vand.u32 %v43, 127
    %45 = vset.pattern.permute.xlu0 0
    %46 = vperm.xlu0 %45, %v36
    %v47 = vpop.permute.xlu0 %46
    %v48 = vlaneseq
    %v49 = vshrl.u32 %v48, 7
    %v50 = vsub.s32 0, %v49
    %v51 = vrot.slane %v47, %v50
    %vm52 = vcmp.eq.s32.totalorder %v44, %v51
    %v53 = vadd.s32 %v36, 16
    %54 = vset.pattern.permute.xlu0 1
    %55 = vperm.xlu0 %54, %v53
    %v56 = vpop.permute.xlu0 %55
    %v57 = vlaneseq
    %v58 = vshrl.u32 %v57, 7
    %v59 = vsub.s32 0, %v58
    %v60 = vrot.slane %v56, %v59
    %vm61 = vcmp.eq.s32.totalorder %v44, %v60
    %vm62 = vmor %vm52, %vm61
    %v63 = vadd.s32 %v36, 32
    %64 = vset.pattern.permute.xlu0 2
    %65 = vperm.xlu0 %64, %v63
    %v66 = vpop.permute.xlu0 %65
    %v67 = vlaneseq
    %v68 = vshrl.u32 %v67, 7
    %v69 = vsub.s32 0, %v68
    %v70 = vrot.slane %v66, %v69
    %vm71 = vcmp.eq.s32.totalorder %v44, %v70
    %vm72 = vmor %vm62, %vm71
    %v73 = vadd.s32 %v36, 48
    %74 = vset.pattern.permute.xlu0 3
    %75 = vperm.xlu0 %74, %v73
    %v76 = vpop.permute.xlu0 %75
    %v77 = vlaneseq
    %v78 = vshrl.u32 %v77, 7
    %v79 = vsub.s32 0, %v78
    %v80 = vrot.slane %v76, %v79
    %vm81 = vcmp.eq.s32.totalorder %v44, %v80
    %vm82 = vmor %vm72, %vm81
    %v83 = vadd.s32 %v36, 64
    %84 = vset.pattern.permute.xlu0 4
    %85 = vperm.xlu0 %84, %v83
    %v86 = vpop.permute.xlu0 %85
    %v87 = vlaneseq
    %v88 = vshrl.u32 %v87, 7
    %v89 = vsub.s32 0, %v88
    %v90 = vrot.slane %v86, %v89
    %vm91 = vcmp.eq.s32.totalorder %v44, %v90
    %vm92 = vmor %vm82, %vm91
    %v93 = vadd.s32 %v36, 80
    %94 = vset.pattern.permute.xlu0 5
    %95 = vperm.xlu0 %94, %v93
    %v96 = vpop.permute.xlu0 %95
    %v97 = vlaneseq
    %v98 = vshrl.u32 %v97, 7
    %v99 = vsub.s32 0, %v98
    %v100 = vrot.slane %v96, %v99
    %vm101 = vcmp.eq.s32.totalorder %v44, %v100
    %vm102 = vmor %vm92, %vm101
    %v103 = vadd.s32 %v36, 96
    %104 = vset.pattern.permute.xlu0 6
    %105 = vperm.xlu0 %104, %v103
    %v106 = vpop.permute.xlu0 %105
    %v107 = vlaneseq
    %v108 = vshrl.u32 %v107, 7
    %v109 = vsub.s32 0, %v108
    %v110 = vrot.slane %v106, %v109
    %vm111 = vcmp.eq.s32.totalorder %v44, %v110
    %vm112 = vmor %vm102, %vm111
    %v113 = vadd.s32 %v36, 112
    %114 = vset.pattern.permute.xlu0 7
    %115 = vperm.xlu0 %114, %v113
    %v116 = vpop.permute.xlu0 %115
    %v117 = vlaneseq
    %v118 = vshrl.u32 %v117, 7
    %v119 = vsub.s32 0, %v118
    %v120 = vrot.slane %v116, %v119
    %vm121 = vcmp.eq.s32.totalorder %v44, %v120
    %vm122 = vmor %vm112, %vm121
    %v123 = vmul.f32 %v42, 1.3
    %v124 = vsel %vm122, %v123, %v42
    %125 = vst [vmem:[#allocation5] sm:$0x1] %v42
    %126 = vst [vmem:[#allocation6] sm:$0x1] %v124
    // Predicated region
    $region22: #{tpu_custom_call.1} parent=1 // pred_check
      _
    $region23: #{tpu_custom_call.1} parent=1 // pred_check_branch
      %128 = sbr.rel (0) target = $region25
    $region24: #{tpu_custom_call.1} parent=1 // pred_region
      %s130 = ssub.s32 16, 16
      %131 = vsyncadd [#allocation4], %s130
      %s133 = sshll.u32 [#allocation5], 4
      %s134 = int_to_ptr.vmem [resolvable:$true] %s133
      %136 = dma.vmem_to_hbm [thread:$0]  %s134, 16, %s4, [#allocation4]
    $region25: #{tpu_custom_call.1} parent=1 // pred_fallthru
      _
    // Predicated region
    $region26: #{tpu_custom_call.1} parent=1 // pred_check
      _
    $region27: #{tpu_custom_call.1} parent=1 // pred_check_branch
      %138 = sbr.rel (0) target = $region29
    $region28: #{tpu_custom_call.1} parent=1 // pred_region
      %s140 = ssub.s32 16, 16
      %141 = vsyncadd [#allocation7], %s140
      %s143 = sshll.u32 [#allocation6], 4
      %s144 = int_to_ptr.vmem [resolvable:$true] %s143
      %146 = dma.vmem_to_hbm [thread:$0]  %s144, 16, %s5, [#allocation7]
    $region29: #{tpu_custom_call.1} parent=1 // pred_fallthru
      _
    // Predicated region
    $region30: #{tpu_custom_call.1} parent=1 // pred_check
      _
    $region31: #{tpu_custom_call.1} parent=1 // pred_check_branch
      %148 = sbr.rel (0) target = $region33
    $region32: #{tpu_custom_call.1} parent=1 // pred_region
      %149 = dma.done [#allocation4], 16
    $region33: #{tpu_custom_call.1} parent=1 // pred_fallthru
      _
    // Predicated region
    $region34: #{tpu_custom_call.1} parent=1 // pred_check
      _
    $region35: #{tpu_custom_call.1} parent=1 // pred_check_branch
      %151 = sbr.rel (0) target = $region37
    $region36: #{tpu_custom_call.1} parent=1 // pred_region
      %152 = dma.done [#allocation7], 16
    $region37: #{tpu_custom_call.1} parent=1 // pred_fallthru
      _
    %153 = vsyncpa [#allocation3], 1
    %154 = vsyncpa [#allocation4], 1
    %155 = vsyncpa [#allocation7], 1

</llo_original>
